<compile_context>
chip_gen: v7x
topology: tpu7x:2x2x1
jax: 0.10.0
libtpu: 0.0.40
codegen_flags: <defaults>
</compile_context>

<pallas_src>
import jax
import jax.numpy as jnp
from jax import lax
from jax.experimental import pallas as pl
from jax.experimental.pallas import tpu as pltpu

LANES = 128          # pad input / hidden / output feature dims to full lane width
BB = 8               # sequences per grid block (one sublane tile)
NEG_INF = -1e30      # logit-lane padding so padded lanes drop out of the logsumexp


def rnn_classify_kernel(x_ref, h0_ref, slab_ref, out_ref, xproj_ref):
    # slab rows: [0:128)   W_ih^T (input-padded x hidden-padded)
    #            [128:256) W_hh^T
    #            [256:384) W_lin^T
    #            row 384 b_rnn (= b_ih + b_hh), row 385 b_lin, rows 386:392 pad
    w_ih = slab_ref[0:LANES, :]                        # [128, 128]
    w_hh = slab_ref[LANES:2 * LANES, :]                # [128, 128]
    w_lin = slab_ref[2 * LANES:3 * LANES, :]           # [128, 128]
    b_rnn = slab_ref[3 * LANES:3 * LANES + 1, :]       # [1, 128]
    b_lin = slab_ref[3 * LANES + 1:3 * LANES + 2, :]   # [1, 128]

    bb = h0_ref.shape[0]                               # 8 sequences per block
    seq_len = x_ref.shape[0] // bb

    # Hoisted input projection: independent of the recurrence, one big matmul
    # off the dependent chain.  Staged in VMEM so the per-step read is a plain
    # tile-aligned vector load instead of a sublane extract from a live vreg.
    xproj_ref[...] = (jnp.dot(x_ref[...], w_ih, preferred_element_type=jnp.float32)
                      + b_rnn)

    def step(t, h):
        r = pl.multiple_of(t * bb, bb)
        xp = xproj_ref[pl.ds(r, bb), :]                # [8, 128] tile-aligned load
        return jnp.tanh(xp + jnp.dot(h, w_hh, preferred_element_type=jnp.float32))

    # seq_len is a trace-time constant; fully unroll (use unroll=4..8 for long seqs).
    h = lax.fori_loop(0, seq_len, step, h0_ref[...], unroll=True)

    # final time-step output -> Linear -> LogSoftmax(dim=-1)
    logits = jnp.dot(h, w_lin, preferred_element_type=jnp.float32) + b_lin
    m = jnp.max(logits, axis=-1, keepdims=True)
    lse = m + jnp.log(jnp.sum(jnp.exp(logits - m), axis=-1, keepdims=True))

    # single packed [16,128] output block: rows 0:8 logp, rows 8:16 hn
    out_ref[0:bb, :] = logits - lse
    out_ref[bb:2 * bb, :] = h


def pack_params(params, input_size, hidden_size, output_size):
    """One-time packing of all parameters into a single [392,128] constant slab."""
    w_ih, w_hh, b_ih, b_hh, w_lin, b_lin = params
    assert max(input_size, hidden_size, output_size) <= LANES
    f32 = jnp.float32
    w_ih_p = jnp.zeros((LANES, LANES), f32).at[:input_size, :hidden_size].set(w_ih.T)
    w_hh_p = jnp.zeros((LANES, LANES), f32).at[:hidden_size, :hidden_size].set(w_hh.T)
    w_lin_p = jnp.zeros((LANES, LANES), f32).at[:hidden_size, :output_size].set(w_lin.T)
    b_rnn_p = jnp.zeros((1, LANES), f32).at[0, :hidden_size].set(b_ih + b_hh)
    b_lin_p = jnp.full((1, LANES), NEG_INF, f32).at[0, :output_size].set(b_lin)
    pad_rows = jnp.zeros((6, LANES), f32)              # pad to 392 (multiple of 8)
    slab = jnp.concatenate(
        [w_ih_p, w_hh_p, w_lin_p, b_rnn_p, b_lin_p, pad_rows], axis=0)  # [392,128]
    return slab, (input_size, hidden_size, output_size)


def my_rnn_forward_batched(xs, h0s, packed):
    """xs: [B, seq_len, input_size]; h0s: [B, hidden_size] -> (logp [B,out], hn [B,hidden])."""
    slab, (input_size, hidden_size, output_size) = packed
    B, seq_len, in_sz = xs.shape
    assert in_sz == input_size
    nb = pl.cdiv(B, BB)
    Bp = nb * BB
    f32 = jnp.float32

    # Lane-pad features, sublane-pad batch to a multiple of 8; within each
    # block of 8 sequences, lay x out time-major: row t*8 + j = seq j at time t.
    x_pad = jnp.zeros((Bp, seq_len, LANES), f32).at[:B, :, :input_size].set(xs)
    x_p = (x_pad.reshape(nb, BB, seq_len, LANES)
           .transpose(0, 2, 1, 3)
           .reshape(nb * seq_len * BB, LANES))
    h0_p = jnp.zeros((Bp, LANES), f32).at[:B, :hidden_size].set(h0s)

    out = pl.pallas_call(
        rnn_classify_kernel,
        out_shape=jax.ShapeDtypeStruct((nb * 2 * BB, LANES), f32),
        grid=(nb,),
        in_specs=[
            pl.BlockSpec((seq_len * BB, LANES), lambda b: (b, 0)),
            pl.BlockSpec((BB, LANES), lambda b: (b, 0)),
            pl.BlockSpec((slab.shape[0], LANES), lambda b: (0, 0)),
        ],
        out_specs=pl.BlockSpec((2 * BB, LANES), lambda b: (b, 0)),
        scratch_shapes=[pltpu.VMEM((seq_len * BB, LANES), f32)],
        compiler_params=pltpu.CompilerParams(dimension_semantics=("parallel",)),
    )(x_p, h0_p, slab)

    out = out.reshape(nb, 2 * BB, LANES)
    logp = out[:, :BB, :output_size].reshape(Bp, output_size)[:B]
    hn = out[:, BB:, :hidden_size].reshape(Bp, hidden_size)[:B]
    return logp, hn


def my_rnn_forward(x, hidden, packed):
    """Original MyRNN.forward semantics: x [seq,input], hidden [1,1,hidden]."""
    _, (_, hidden_size, _) = packed
    logp, hn = my_rnn_forward_batched(x[None], hidden.reshape(1, hidden_size), packed)
    return logp, hn.reshape(1, 1, hidden_size)


def init_params(key, input_size, hidden_size, output_size):
    """Deterministic init matching PyTorch shapes (uniform +/- 1/sqrt(fan))."""
    ks = jax.random.split(key, 6)
    k_rnn = 1.0 / jnp.sqrt(hidden_size)
    w_ih = jax.random.uniform(ks[0], (hidden_size, input_size), jnp.float32, -k_rnn, k_rnn)
    w_hh = jax.random.uniform(ks[1], (hidden_size, hidden_size), jnp.float32, -k_rnn, k_rnn)
    b_ih = jax.random.uniform(ks[2], (hidden_size,), jnp.float32, -k_rnn, k_rnn)
    b_hh = jax.random.uniform(ks[3], (hidden_size,), jnp.float32, -k_rnn, k_rnn)
    w_lin = jax.random.uniform(ks[4], (output_size, hidden_size), jnp.float32, -k_rnn, k_rnn)
    b_lin = jax.random.uniform(ks[5], (output_size,), jnp.float32, -k_rnn, k_rnn)
    return w_ih, w_hh, b_ih, b_hh, w_lin, b_lin


def reference_forward(x, hidden, params):
    """Pure-JAX reference of MyRNN.forward for a correctness check."""
    w_ih, w_hh, b_ih, b_hh, w_lin, b_lin = params
    h = hidden.reshape(1, -1)
    for t in range(x.shape[0]):
        h = jnp.tanh(x[t:t + 1] @ w_ih.T + b_ih + h @ w_hh.T + b_hh)
    logits = h @ w_lin.T + b_lin
    logp = logits - jax.scipy.special.logsumexp(logits, axis=-1, keepdims=True)
    return logp, h.reshape(1, 1, -1)


if __name__ == "__main__":
    seq_len, input_size, hidden_size, output_size = 8, 57, 32, 18

    key = jax.random.PRNGKey(0)
    k_param, k_x, k_xb = jax.random.split(key, 3)
    params = init_params(k_param, input_size, hidden_size, output_size)
    packed = pack_params(params, input_size, hidden_size, output_size)  # once, at init

    # --- single-sequence path (exact MyRNN.forward interface) ---
    x = jax.random.normal(k_x, (seq_len, input_size), jnp.float32)
    hidden0 = jnp.zeros((1, 1, hidden_size), jnp.float32)   # MyRNN.inithidden()

    logp, hn = my_rnn_forward(x, hidden0, packed)
    logp = jax.block_until_ready(logp)
    hn = jax.block_until_ready(hn)

    ref_logp, ref_hn = reference_forward(x, hidden0, params)
    assert jnp.allclose(logp, ref_logp, atol=1e-5, rtol=1e-5)
    assert jnp.allclose(hn, ref_hn, atol=1e-5, rtol=1e-5)
    assert logp.shape == (1, output_size) and hn.shape == (1, 1, hidden_size)

    # --- batched path (B sequences share one kernel launch) ---
    B = 4
    xb = jax.random.normal(k_xb, (B, seq_len, input_size), jnp.float32)
    h0b = jnp.zeros((B, hidden_size), jnp.float32)
    logp_b, hn_b = my_rnn_forward_batched(xb, h0b, packed)
    logp_b = jax.block_until_ready(logp_b)
    hn_b = jax.block_until_ready(hn_b)
    for i in range(B):
        rl, rh = reference_forward(xb[i], jnp.zeros((1, 1, hidden_size), jnp.float32), params)
        assert jnp.allclose(logp_b[i:i + 1], rl, atol=1e-5, rtol=1e-5)
        assert jnp.allclose(hn_b[i:i + 1], rh.reshape(1, hidden_size), atol=1e-5, rtol=1e-5)

    print("KERNEL_OK")
</pallas_src>

<mosaic_0001>
module attributes {stable_mosaic.version = 11 : i64} {
  func.func @rnn_classify_kernel(%arg0: i32, %arg1: memref<64x128xf32, #tpu.memory_space<vmem>>, %arg2: memref<8x128xf32, #tpu.memory_space<vmem>>, %arg3: memref<392x128xf32, #tpu.memory_space<vmem>>, %arg4: memref<16x128xf32, #tpu.memory_space<vmem>>, %arg5: memref<64x128xf32, #tpu.memory_space<vmem>>) attributes {dimension_semantics = [#tpu.dimension_semantics<parallel>], iteration_bounds = array<i64: 1>, scalar_prefetch = 0 : i64, scratch_operands = 1 : i64, tpu.core_type = #tpu.core_type<tc>, window_params = [{transform_indices = @transform_0, window_bounds = array<i64: 64, 128>}, {transform_indices = @transform_1, window_bounds = array<i64: 8, 128>}, {pipeline_mode = #tpu.pipeline_mode<synchronous>, transform_indices = @transform_2, window_bounds = array<i64: 392, 128>}, {transform_indices = @transform_3, window_bounds = array<i64: 16, 128>}]} {
    %c0 = arith.constant 0 : index
    %c0_0 = arith.constant 0 : index
    %0 = vector.load %arg3[%c0, %c0_0] : memref<392x128xf32, #tpu.memory_space<vmem>>, vector<128x128xf32>
    %c128 = arith.constant 128 : index
    %c0_1 = arith.constant 0 : index
    %1 = vector.load %arg3[%c128, %c0_1] : memref<392x128xf32, #tpu.memory_space<vmem>>, vector<128x128xf32>
    %c256 = arith.constant 256 : index
    %c0_2 = arith.constant 0 : index
    %2 = vector.load %arg3[%c256, %c0_2] : memref<392x128xf32, #tpu.memory_space<vmem>>, vector<128x128xf32>
    %c384 = arith.constant 384 : index
    %c0_3 = arith.constant 0 : index
    %3 = vector.load %arg3[%c384, %c0_3] : memref<392x128xf32, #tpu.memory_space<vmem>>, vector<1x128xf32>
    %c385 = arith.constant 385 : index
    %c0_4 = arith.constant 0 : index
    %4 = vector.load %arg3[%c385, %c0_4] : memref<392x128xf32, #tpu.memory_space<vmem>>, vector<1x128xf32>
    %c0_5 = arith.constant 0 : index
    %c0_6 = arith.constant 0 : index
    %5 = vector.load %arg1[%c0_5, %c0_6] : memref<64x128xf32, #tpu.memory_space<vmem>>, vector<64x128xf32>
    %cst = arith.constant dense<0.000000e+00> : vector<64x128xf32>
    %6 = tpu.matmul %5, %0, %cst {dimension_numbers = #tpu.dot_dimension_numbers<[1], [0], [0], [1], [0, 0, 1, 1], [], []>} : vector<64x128xf32>, vector<128x128xf32>, vector<64x128xf32> -> vector<64x128xf32>
    %7 = vector.broadcast %3 : vector<1x128xf32> to vector<64x128xf32>
    %8 = arith.addf %6, %7 : vector<64x128xf32>
    %c0_7 = arith.constant 0 : index
    %c0_8 = arith.constant 0 : index
    %9 = vector.load %arg5[%c0_7, %c0_8] : memref<64x128xf32, #tpu.memory_space<vmem>>, vector<64x128xf32>
    tpu.vector_store %arg5[%c0_7, %c0_8], %8 {strides = array<i32>} : memref<64x128xf32, #tpu.memory_space<vmem>>, vector<64x128xf32>,
    %c0_9 = arith.constant 0 : index
    %c0_10 = arith.constant 0 : index
    %10 = vector.load %arg2[%c0_9, %c0_10] : memref<8x128xf32, #tpu.memory_space<vmem>>, vector<8x128xf32>
    %c0_i32 = arith.constant 0 : i32
    %c8_i32 = arith.constant 8 : i32
    %11 = arith.muli %c0_i32, %c8_i32 : i32
    %12 = tpu.assume_multiple %11, 8 : i32
    %13 = arith.index_cast %12 : i32 to index
    %c0_11 = arith.constant 0 : index
    %14 = vector.load %arg5[%13, %c0_11] : memref<64x128xf32, #tpu.memory_space<vmem>>, vector<8x128xf32>
    %cst_12 = arith.constant dense<0.000000e+00> : vector<8x128xf32>
    %15 = tpu.matmul %10, %1, %cst_12 {dimension_numbers = #tpu.dot_dimension_numbers<[1], [0], [0], [1], [0, 0, 1, 1], [], []>} : vector<8x128xf32>, vector<128x128xf32>, vector<8x128xf32> -> vector<8x128xf32>
    %16 = arith.addf %14, %15 : vector<8x128xf32>
    %17 = math.tanh %16 : vector<8x128xf32>
    %c1_i32 = arith.constant 1 : i32
    %c8_i32_13 = arith.constant 8 : i32
    %18 = arith.muli %c1_i32, %c8_i32_13 : i32
    %19 = tpu.assume_multiple %18, 8 : i32
    %20 = arith.index_cast %19 : i32 to index
    %c0_14 = arith.constant 0 : index
    %21 = vector.load %arg5[%20, %c0_14] : memref<64x128xf32, #tpu.memory_space<vmem>>, vector<8x128xf32>
    %cst_15 = arith.constant dense<0.000000e+00> : vector<8x128xf32>
    %22 = tpu.matmul %17, %1, %cst_15 {dimension_numbers = #tpu.dot_dimension_numbers<[1], [0], [0], [1], [0, 0, 1, 1], [], []>} : vector<8x128xf32>, vector<128x128xf32>, vector<8x128xf32> -> vector<8x128xf32>
    %23 = arith.addf %21, %22 : vector<8x128xf32>
    %24 = math.tanh %23 : vector<8x128xf32>
    %c2_i32 = arith.constant 2 : i32
    %c8_i32_16 = arith.constant 8 : i32
    %25 = arith.muli %c2_i32, %c8_i32_16 : i32
    %26 = tpu.assume_multiple %25, 8 : i32
    %27 = arith.index_cast %26 : i32 to index
    %c0_17 = arith.constant 0 : index
    %28 = vector.load %arg5[%27, %c0_17] : memref<64x128xf32, #tpu.memory_space<vmem>>, vector<8x128xf32>
    %cst_18 = arith.constant dense<0.000000e+00> : vector<8x128xf32>
    %29 = tpu.matmul %24, %1, %cst_18 {dimension_numbers = #tpu.dot_dimension_numbers<[1], [0], [0], [1], [0, 0, 1, 1], [], []>} : vector<8x128xf32>, vector<128x128xf32>, vector<8x128xf32> -> vector<8x128xf32>
    %30 = arith.addf %28, %29 : vector<8x128xf32>
    %31 = math.tanh %30 : vector<8x128xf32>
    %c3_i32 = arith.constant 3 : i32
    %c8_i32_19 = arith.constant 8 : i32
    %32 = arith.muli %c3_i32, %c8_i32_19 : i32
    %33 = tpu.assume_multiple %32, 8 : i32
    %34 = arith.index_cast %33 : i32 to index
    %c0_20 = arith.constant 0 : index
    %35 = vector.load %arg5[%34, %c0_20] : memref<64x128xf32, #tpu.memory_space<vmem>>, vector<8x128xf32>
    %cst_21 = arith.constant dense<0.000000e+00> : vector<8x128xf32>
    %36 = tpu.matmul %31, %1, %cst_21 {dimension_numbers = #tpu.dot_dimension_numbers<[1], [0], [0], [1], [0, 0, 1, 1], [], []>} : vector<8x128xf32>, vector<128x128xf32>, vector<8x128xf32> -> vector<8x128xf32>
    %37 = arith.addf %35, %36 : vector<8x128xf32>
    %38 = math.tanh %37 : vector<8x128xf32>
    %c4_i32 = arith.constant 4 : i32
    %c8_i32_22 = arith.constant 8 : i32
    %39 = arith.muli %c4_i32, %c8_i32_22 : i32
    %40 = tpu.assume_multiple %39, 8 : i32
    %41 = arith.index_cast %40 : i32 to index
    %c0_23 = arith.constant 0 : index
    %42 = vector.load %arg5[%41, %c0_23] : memref<64x128xf32, #tpu.memory_space<vmem>>, vector<8x128xf32>
    %cst_24 = arith.constant dense<0.000000e+00> : vector<8x128xf32>
    %43 = tpu.matmul %38, %1, %cst_24 {dimension_numbers = #tpu.dot_dimension_numbers<[1], [0], [0], [1], [0, 0, 1, 1], [], []>} : vector<8x128xf32>, vector<128x128xf32>, vector<8x128xf32> -> vector<8x128xf32>
    %44 = arith.addf %42, %43 : vector<8x128xf32>
    %45 = math.tanh %44 : vector<8x128xf32>
    %c5_i32 = arith.constant 5 : i32
    %c8_i32_25 = arith.constant 8 : i32
    %46 = arith.muli %c5_i32, %c8_i32_25 : i32
    %47 = tpu.assume_multiple %46, 8 : i32
    %48 = arith.index_cast %47 : i32 to index
    %c0_26 = arith.constant 0 : index
    %49 = vector.load %arg5[%48, %c0_26] : memref<64x128xf32, #tpu.memory_space<vmem>>, vector<8x128xf32>
    %cst_27 = arith.constant dense<0.000000e+00> : vector<8x128xf32>
    %50 = tpu.matmul %45, %1, %cst_27 {dimension_numbers = #tpu.dot_dimension_numbers<[1], [0], [0], [1], [0, 0, 1, 1], [], []>} : vector<8x128xf32>, vector<128x128xf32>, vector<8x128xf32> -> vector<8x128xf32>
    %51 = arith.addf %49, %50 : vector<8x128xf32>
    %52 = math.tanh %51 : vector<8x128xf32>
    %c6_i32 = arith.constant 6 : i32
    %c8_i32_28 = arith.constant 8 : i32
    %53 = arith.muli %c6_i32, %c8_i32_28 : i32
    %54 = tpu.assume_multiple %53, 8 : i32
    %55 = arith.index_cast %54 : i32 to index
    %c0_29 = arith.constant 0 : index
    %56 = vector.load %arg5[%55, %c0_29] : memref<64x128xf32, #tpu.memory_space<vmem>>, vector<8x128xf32>
    %cst_30 = arith.constant dense<0.000000e+00> : vector<8x128xf32>
    %57 = tpu.matmul %52, %1, %cst_30 {dimension_numbers = #tpu.dot_dimension_numbers<[1], [0], [0], [1], [0, 0, 1, 1], [], []>} : vector<8x128xf32>, vector<128x128xf32>, vector<8x128xf32> -> vector<8x128xf32>
    %58 = arith.addf %56, %57 : vector<8x128xf32>
    %59 = math.tanh %58 : vector<8x128xf32>
    %c7_i32 = arith.constant 7 : i32
    %c8_i32_31 = arith.constant 8 : i32
    %60 = arith.muli %c7_i32, %c8_i32_31 : i32
    %61 = tpu.assume_multiple %60, 8 : i32
    %62 = arith.index_cast %61 : i32 to index
    %c0_32 = arith.constant 0 : index
    %63 = vector.load %arg5[%62, %c0_32] : memref<64x128xf32, #tpu.memory_space<vmem>>, vector<8x128xf32>
    %cst_33 = arith.constant dense<0.000000e+00> : vector<8x128xf32>
    %64 = tpu.matmul %59, %1, %cst_33 {dimension_numbers = #tpu.dot_dimension_numbers<[1], [0], [0], [1], [0, 0, 1, 1], [], []>} : vector<8x128xf32>, vector<128x128xf32>, vector<8x128xf32> -> vector<8x128xf32>
    %65 = arith.addf %63, %64 : vector<8x128xf32>
    %66 = math.tanh %65 : vector<8x128xf32>
    %c8_i32_34 = arith.constant 8 : i32
    %cst_35 = arith.constant dense<0.000000e+00> : vector<8x128xf32>
    %67 = tpu.matmul %66, %2, %cst_35 {dimension_numbers = #tpu.dot_dimension_numbers<[1], [0], [0], [1], [0, 0, 1, 1], [], []>} : vector<8x128xf32>, vector<128x128xf32>, vector<8x128xf32> -> vector<8x128xf32>
    %68 = vector.broadcast %4 : vector<1x128xf32> to vector<8x128xf32>
    %69 = arith.addf %67, %68 : vector<8x128xf32>
    %cst_36 = arith.constant dense<0xFF800000> : vector<8xf32>
    %70 = vector.multi_reduction <maximumf>, %69, %cst_36 [1] : vector<8x128xf32> to vector<8xf32>
    %71 = vector.shape_cast %70 : vector<8xf32> to vector<8x1xf32>
    %72 = vector.broadcast %71 : vector<8x1xf32> to vector<8x128xf32>
    %73 = arith.subf %69, %72 : vector<8x128xf32>
    %74 = math.exp %73 : vector<8x128xf32>
    %cst_37 = arith.constant dense<0.000000e+00> : vector<8xf32>
    %75 = vector.multi_reduction <add>, %74, %cst_37 [1] : vector<8x128xf32> to vector<8xf32>
    %76 = vector.shape_cast %75 : vector<8xf32> to vector<8x1xf32>
    %77 = math.log %76 : vector<8x1xf32>
    %78 = arith.addf %71, %77 : vector<8x1xf32>
    %79 = vector.broadcast %78 : vector<8x1xf32> to vector<8x128xf32>
    %80 = arith.subf %69, %79 : vector<8x128xf32>
    %c0_38 = arith.constant 0 : index
    %c0_39 = arith.constant 0 : index
    %81 = vector.load %arg4[%c0_38, %c0_39] : memref<16x128xf32, #tpu.memory_space<vmem>>, vector<8x128xf32>
    tpu.vector_store %arg4[%c0_38, %c0_39], %80 {strides = array<i32>} : memref<16x128xf32, #tpu.memory_space<vmem>>, vector<8x128xf32>,
    %c8 = arith.constant 8 : index
    %c0_40 = arith.constant 0 : index
    %82 = vector.load %arg4[%c8, %c0_40] : memref<16x128xf32, #tpu.memory_space<vmem>>, vector<8x128xf32>
    tpu.vector_store %arg4[%c8, %c0_40], %66 {strides = array<i32>} : memref<16x128xf32, #tpu.memory_space<vmem>>, vector<8x128xf32>,
    return
  }
  func.func @transform_0(%arg0: i32) -> (i32, i32) {
    %c0_i32 = arith.constant 0 : i32
    %c0_i32_0 = arith.constant 0 : i32
    return %arg0, %c0_i32 : i32, i32
  }
  func.func @transform_1(%arg0: i32) -> (i32, i32) {
    %c0_i32 = arith.constant 0 : i32
    %c0_i32_0 = arith.constant 0 : i32
    return %arg0, %c0_i32 : i32, i32
  }
  func.func @transform_2(%arg0: i32) -> (i32, i32) {
    %c0_i32 = arith.constant 0 : i32
    %c0_i32_0 = arith.constant 0 : i32
    %c0_i32_1 = arith.constant 0 : i32
    return %c0_i32, %c0_i32_0 : i32, i32
  }
  func.func @transform_3(%arg0: i32) -> (i32, i32) {
    %c0_i32 = arith.constant 0 : i32
    %c0_i32_0 = arith.constant 0 : i32
    return %arg0, %c0_i32 : i32, i32
  }
}

</mosaic_0001>

<llo_original>
// kernel: tpu_custom_call.1
$region0: #{tpu_custom_call.1}
  #allocation0 [shape = 'u32[]', space=smem, size = 0x4, offset = 0x4, fixed_abs, tag = 'smem constant byte address 0x4 - core index']
  #allocation1 [shape = 'u32[144,128]{1,0:T(1,128)}', space=vmem, size = 0x12000, scoped, tag = 'internal scratch']
  #allocation2 [shape = 'f32[64,128]{1,0:T(8,128)}', space=vmem, size = 0x8000, scoped, tag = 'scratch operand']
  %s0 = inlined_call_operand.hbm [shape: f32[64,128], index: 0, kind: input, shape index: {}]
  %s1 = inlined_call_operand.hbm [shape: f32[8,128], index: 1, kind: input, shape index: {}]
  %s2 = inlined_call_operand.hbm [shape: f32[392,128], index: 2, kind: input, shape index: {}]
  %s3 = inlined_call_operand.hbm [shape: f32[16,128], index: 3, kind: output, shape index: {}]
  %s4 = sld [smem:[#allocation0]]
  $region34: #{tpu_custom_call.1} parent=0
    _
  %s6 = ssub.s32 1, %s4
  %s7 = scalar_select 0, %s6, %s4
  $region1: #{tpu_custom_call.1} parent=0
    #allocation3 [shape = 'u8[32768]{0}', space=vmem, size = 0x8000, scoped, tag = 'input window, operand 0, single buffered']
    #allocation4 [shape = 's32[1]{0}', space=sflag, size = 0x4, scoped, tag = 'scoped memory for tpu_custom_call.1']
    #allocation5 [shape = 's32[1]{0}', space=sflag, size = 0x4, scoped, tag = 'scoped memory for tpu_custom_call.1']
    #allocation6 [shape = 'u8[4096]{0}', space=vmem, size = 0x1000, scoped, tag = 'input window, operand 1, single buffered']
    #allocation7 [shape = 's32[1]{0}', space=sflag, size = 0x4, scoped, tag = 'scoped memory for tpu_custom_call.1']
    #allocation8 [shape = 'u8[200704]{0}', space=vmem, size = 0x31000, scoped, tag = 'input window, operand 2, single buffered']
    #allocation9 [shape = 'u8[8192]{0}', space=vmem, size = 0x2000, scoped, tag = 'output window, operand 0, single buffered']
    %8 = vsyncpa [#allocation4], 0
    %9 = vsyncpa [#allocation7], 0
    %10 = vsyncpa [#allocation5], 0
    // Predicated region
    $region2: #{tpu_custom_call.1} parent=1 // pred_check
      _
    $region3: #{tpu_custom_call.1} parent=1 // pred_check_branch
      %12 = sbr.rel (0) target = $region5
    $region4: #{tpu_custom_call.1} parent=1 // pred_region
      %s14 = ssub.s32 1024, 1024
      %15 = vsyncadd [#allocation4], %s14
      %s16 = sshll.u32 [#allocation3], 4
      %s17 = int_to_ptr.vmem [resolvable:$true] %s16
      %22 = dma.hbm_to_vmem [thread:$0]  %s0, 1024, %s17, [#allocation4], 128, 128, 8
    $region5: #{tpu_custom_call.1} parent=1 // pred_fallthru
      _
    // Predicated region
    $region6: #{tpu_custom_call.1} parent=1 // pred_check
      _
    $region7: #{tpu_custom_call.1} parent=1 // pred_check_branch
      %24 = sbr.rel (0) target = $region9
    $region8: #{tpu_custom_call.1} parent=1 // pred_region
      %s26 = ssub.s32 128, 128
      %27 = vsyncadd [#allocation7], %s26
      %s29 = sshll.u32 [#allocation6], 4
      %s30 = int_to_ptr.vmem [resolvable:$true] %s29
      %32 = dma.hbm_to_vmem [thread:$0]  %s1, 128, %s30, [#allocation7]
    $region9: #{tpu_custom_call.1} parent=1 // pred_fallthru
      _
    // Predicated region
    $region10: #{tpu_custom_call.1} parent=1 // pred_check
      _
    $region11: #{tpu_custom_call.1} parent=1 // pred_check_branch
      %34 = sbr.rel (0) target = $region13
    $region12: #{tpu_custom_call.1} parent=1 // pred_region
      %s36 = ssub.s32 6272, 6272
      %37 = vsyncadd [#allocation7], %s36
      %s38 = sshll.u32 [#allocation8], 4
      %s39 = int_to_ptr.vmem [resolvable:$true] %s38
      %44 = dma.hbm_to_vmem [thread:$0]  %s2, 6272, %s39, [#allocation7], 128, 128, 8
    $region13: #{tpu_custom_call.1} parent=1 // pred_fallthru
      _
    // Predicated region
    $region14: #{tpu_custom_call.1} parent=1 // pred_check
      _
    $region15: #{tpu_custom_call.1} parent=1 // pred_check_branch
      %46 = sbr.rel (0) target = $region17
    $region16: #{tpu_custom_call.1} parent=1 // pred_region
      %47 = dma.done [#allocation4], 1024
    $region17: #{tpu_custom_call.1} parent=1 // pred_fallthru
      _
    // Predicated region
    $region18: #{tpu_custom_call.1} parent=1 // pred_check
      _
    $region19: #{tpu_custom_call.1} parent=1 // pred_check_branch
      %49 = sbr.rel (0) target = $region21
    $region20: #{tpu_custom_call.1} parent=1 // pred_region
      %50 = dma.done [#allocation7], 128
    $region21: #{tpu_custom_call.1} parent=1 // pred_fallthru
      _
    // Predicated region
    $region22: #{tpu_custom_call.1} parent=1 // pred_check
      _
    $region23: #{tpu_custom_call.1} parent=1 // pred_check_branch
      %52 = sbr.rel (0) target = $region25
    $region24: #{tpu_custom_call.1} parent=1 // pred_region
      %53 = dma.done [#allocation7], 6272
    $region25: #{tpu_custom_call.1} parent=1 // pred_fallthru
      _
    %v54 = vld [vmem:[#allocation8] sm:$0xff]
    %v55 = vld [vmem:[#allocation8 + $0x8] sm:$0xff]
    %v56 = vld [vmem:[#allocation8 + $0x10] sm:$0xff]
    %v57 = vld [vmem:[#allocation8 + $0x18] sm:$0xff]
    %v58 = vld [vmem:[#allocation8 + $0x20] sm:$0xff]
    %v59 = vld [vmem:[#allocation8 + $0x28] sm:$0xff]
    %v60 = vld [vmem:[#allocation8 + $0x30] sm:$0xff]
    %v61 = vld [vmem:[#allocation8 + $0x38] sm:$0xff]
    %v62 = vld [vmem:[#allocation8 + $0x40] sm:$0xff]
    %v63 = vld [vmem:[#allocation8 + $0x48] sm:$0xff]
    %v64 = vld [vmem:[#allocation8 + $0x50] sm:$0xff]
    %v65 = vld [vmem:[#allocation8 + $0x58] sm:$0xff]
    %v66 = vld [vmem:[#allocation8 + $0x60] sm:$0xff]
    %v67 = vld [vmem:[#allocation8 + $0x68] sm:$0xff]
    %v68 = vld [vmem:[#allocation8 + $0x70] sm:$0xff]
    %v69 = vld [vmem:[#allocation8 + $0x78] sm:$0xff]
    %v70 = vld [vmem:[#allocation8 + $0x80] sm:$0xff]
    %v71 = vld [vmem:[#allocation8 + $0x88] sm:$0xff]
    %v72 = vld [vmem:[#allocation8 + $0x90] sm:$0xff]
    %v73 = vld [vmem:[#allocation8 + $0x98] sm:$0xff]
    %v74 = vld [vmem:[#allocation8 + $0xa0] sm:$0xff]
    %v75 = vld [vmem:[#allocation8 + $0xa8] sm:$0xff]
    %v76 = vld [vmem:[#allocation8 + $0xb0] sm:$0xff]
    %v77 = vld [vmem:[#allocation8 + $0xb8] sm:$0xff]
    %v78 = vld [vmem:[#allocation8 + $0xc0] sm:$0xff]
    %v79 = vld [vmem:[#allocation8 + $0xc8] sm:$0xff]
    %v80 = vld [vmem:[#allocation8 + $0xd0] sm:$0xff]
    %v81 = vld [vmem:[#allocation8 + $0xd8] sm:$0xff]
    %v82 = vld [vmem:[#allocation8 + $0xe0] sm:$0xff]
    %v83 = vld [vmem:[#allocation8 + $0xe8] sm:$0xff]
    %v84 = vld [vmem:[#allocation8 + $0xf0] sm:$0xff]
    %v85 = vld [vmem:[#allocation8 + $0xf8] sm:$0xff]
    %v86 = vld [vmem:[#allocation8 + $0x100] sm:$0xff]
    %v87 = vld [vmem:[#allocation8 + $0x108] sm:$0xff]
    %v88 = vld [vmem:[#allocation8 + $0x110] sm:$0xff]
    %v89 = vld [vmem:[#allocation8 + $0x118] sm:$0xff]
    %v90 = vld [vmem:[#allocation8 + $0x120] sm:$0xff]
    %v91 = vld [vmem:[#allocation8 + $0x128] sm:$0xff]
    %v92 = vld [vmem:[#allocation8 + $0x130] sm:$0xff]
    %v93 = vld [vmem:[#allocation8 + $0x138] sm:$0xff]
    %v94 = vld [vmem:[#allocation8 + $0x140] sm:$0xff]
    %v95 = vld [vmem:[#allocation8 + $0x148] sm:$0xff]
    %v96 = vld [vmem:[#allocation8 + $0x150] sm:$0xff]
    %v97 = vld [vmem:[#allocation8 + $0x158] sm:$0xff]
    %v98 = vld [vmem:[#allocation8 + $0x160] sm:$0xff]
    %v99 = vld [vmem:[#allocation8 + $0x168] sm:$0xff]
    %v100 = vld [vmem:[#allocation8 + $0x170] sm:$0xff]
    %v101 = vld [vmem:[#allocation8 + $0x178] sm:$0xff]
    %v102 = vld [vmem:[#allocation8 + $0x180] sm:$0x1]
    %v103 = vld [vmem:[#allocation8 + $0x181] sm:$0x1]
    %v104 = vld [vmem:[#allocation3] sm:$0xff]
    %v105 = vld [vmem:[#allocation3 + $0x8] sm:$0xff]
    %v106 = vld [vmem:[#allocation3 + $0x10] sm:$0xff]
    %v107 = vld [vmem:[#allocation3 + $0x18] sm:$0xff]
    %v108 = vld [vmem:[#allocation3 + $0x20] sm:$0xff]
    %v109 = vld [vmem:[#allocation3 + $0x28] sm:$0xff]
    %v110 = vld [vmem:[#allocation3 + $0x30] sm:$0xff]
    %v111 = vld [vmem:[#allocation3 + $0x38] sm:$0xff]
    %v112 = vlaneseq
    %v113 = vshrl.u32 %v112, 7
    %v114 = vsub.s32 0, %v113
    %v115 = vrot.slane %v102, %v114
    %116 = vmatprep.subr.mxu0 0.0
    %117 = vmatpush1.msra.mxu0 %v54
    %118 = vmatprep.subr.mxu0 0.0
    %119 = vmatpush1.msra.mxu0 %v55
    %120 = vmatprep.subr.mxu0 0.0
    %121 = vmatpush1.msra.mxu0 %v56
    %122 = vmatprep.subr.mxu0 0.0
    %123 = vmatpush1.msra.mxu0 %v57
    %124 = vmatprep.subr.mxu0 0.0
    %125 = vmatpush1.msra.mxu0 %v58
    %126 = vmatprep.subr.mxu0 0.0
    %127 = vmatpush1.msra.mxu0 %v59
    %128 = vmatprep.subr.mxu0 0.0
    %129 = vmatpush1.msra.mxu0 %v60
    %130 = vmatprep.subr.mxu0 0.0
    %131 = vmatpush1.msra.mxu0 %v61
    %132 = vmatprep.subr.mxu0 0.0
    %133 = vmatpush1.msra.mxu0 %v62
    %134 = vmatprep.subr.mxu0 0.0
    %135 = vmatpush1.msra.mxu0 %v63
    %136 = vmatprep.subr.mxu0 0.0
    %137 = vmatpush1.msra.mxu0 %v64
    %138 = vmatprep.subr.mxu0 0.0
    %139 = vmatpush1.msra.mxu0 %v65
    %140 = vmatprep.subr.mxu0 0.0
    %141 = vmatpush1.msra.mxu0 %v66
    %142 = vmatprep.subr.mxu0 0.0
    %143 = vmatpush1.msra.mxu0 %v67
    %144 = vmatprep.subr.mxu0 0.0
    %145 = vmatpush1.msra.mxu0 %v68
    %146 = vmatprep.subr.mxu0 0.0
    %147 = vmatpush1.msra.mxu0 %v69
    %148 = vmatprep.subr.mxu0 0.0
    %149 = vmatpush1.msra.mxu0 0.0
    %150 = vmatprep.subr.mxu0 0.0
    %151 = vmatpush1.msra.mxu0 0.0
    %152 = vmatprep.subr.mxu0 0.0
    %153 = vmatpush1.msra.mxu0 0.0
    %154 = vmatprep.subr.mxu0 0.0
    %155 = vmatpush1.msra.mxu0 0.0
    %156 = vmatprep.subr.mxu0 0.0
    %157 = vmatpush1.msra.mxu0 0.0
    %158 = vmatprep.subr.mxu0 0.0
    %159 = vmatpush1.msra.mxu0 0.0
    %160 = vmatprep.subr.mxu0 0.0
    %161 = vmatpush1.msra.mxu0 0.0
    %162 = vmatprep.subr.mxu0 0.0
    %163 = vmatpush1.msra.mxu0 0.0
    %164 = vmatprep.subr.mxu0 0.0
    %165 = vmatpush1.msra.mxu0 0.0
    %166 = vmatprep.subr.mxu0 0.0
    %167 = vmatpush1.msra.mxu0 0.0
    %168 = vmatprep.subr.mxu0 0.0
    %169 = vmatpush1.msra.mxu0 0.0
    %170 = vmatprep.subr.mxu0 0.0
    %171 = vmatpush1.msra.mxu0 0.0
    %172 = vmatprep.subr.mxu0 0.0
    %173 = vmatpush1.msra.mxu0 0.0
    %174 = vmatprep.subr.mxu0 0.0
    %175 = vmatpush1.msra.mxu0 0.0
    %176 = vmatprep.subr.mxu0 0.0
    %177 = vmatpush1.msra.mxu0 0.0
    %178 = vmatprep.subr.mxu0 0.0
    %179 = vmatpush1.msra.mxu0 0.0
    %180 = vmatprep.mubr.f32.mxu0 0.0
    %181 = vmatmul.mubr.f32.gmra.mrb[0].mxu0 %v104
    %v182 = vpop.f32.mrb[0].mxu0
    %v183 = vadd.f32 %v115, %v182
    %v184 = vpop.f32.mrb[0].mxu0
    %185 = vmatprep.mubr.f32.mxu0 0.0
    %186 = vmatmul.mubr.f32.gmra.mrb[0].mxu0 %v105
    %v187 = vpop.f32.mrb[0].mxu0
    %v188 = vadd.f32 %v115, %v187
    %v189 = vpop.f32.mrb[0].mxu0
    %190 = vmatprep.mubr.f32.mxu0 0.0
    %191 = vmatmul.mubr.f32.gmra.mrb[0].mxu0 %v106
    %v192 = vpop.f32.mrb[0].mxu0
    %v193 = vadd.f32 %v115, %v192
    %v194 = vpop.f32.mrb[0].mxu0
    %195 = vmatprep.mubr.f32.mxu0 0.0
    %196 = vmatmul.mubr.f32.gmra.mrb[0].mxu0 %v107
    %v197 = vpop.f32.mrb[0].mxu0
    %v198 = vadd.f32 %v115, %v197
    %v199 = vpop.f32.mrb[0].mxu0
    %200 = vmatprep.mubr.f32.mxu0 0.0
    %201 = vmatmul.mubr.f32.gmra.mrb[0].mxu0 %v108
    %v202 = vpop.f32.mrb[0].mxu0
    %v203 = vadd.f32 %v115, %v202
    %v204 = vpop.f32.mrb[0].mxu0
    %205 = vmatprep.mubr.f32.mxu0 0.0
    %206 = vmatmul.mubr.f32.gmra.mrb[0].mxu0 %v109
    %v207 = vpop.f32.mrb[0].mxu0
    %v208 = vadd.f32 %v115, %v207
    %v209 = vpop.f32.mrb[0].mxu0
    %210 = vmatprep.mubr.f32.mxu0 0.0
    %211 = vmatmul.mubr.f32.gmra.mrb[0].mxu0 %v110
    %v212 = vpop.f32.mrb[0].mxu0
    %v213 = vadd.f32 %v115, %v212
    %v214 = vpop.f32.mrb[0].mxu0
    %215 = vmatprep.mubr.f32.mxu0 0.0
    %216 = vmatmul.mubr.f32.gmra.mrb[0].mxu0 %v111
    %v217 = vpop.f32.mrb[0].mxu0
    %v218 = vadd.f32 %v115, %v217
    %v219 = vpop.f32.mrb[0].mxu0
    %220 = vdwg.mxu0
    %221 = vst [vmem:[#allocation2] sm:$0xff] %v183
    %222 = vst [vmem:[#allocation2 + $0x8] sm:$0xff] %v188
    %223 = vst [vmem:[#allocation2 + $0x10] sm:$0xff] %v193
    %224 = vst [vmem:[#allocation2 + $0x18] sm:$0xff] %v198
    %225 = vst [vmem:[#allocation2 + $0x20] sm:$0xff] %v203
    %226 = vst [vmem:[#allocation2 + $0x28] sm:$0xff] %v208
    %227 = vst [vmem:[#allocation2 + $0x30] sm:$0xff] %v213
    %228 = vst [vmem:[#allocation2 + $0x38] sm:$0xff] %v218
    %v229 = vld [vmem:[#allocation6] sm:$0xff]
    %v230 = vld [vmem:[#allocation2] sm:$0xff]
    %231 = vmatprep.subr.mxu0 0.0
    %232 = vmatpush1.msra.mxu0 %v70
    %233 = vmatprep.subr.mxu0 0.0
    %234 = vmatpush1.msra.mxu0 %v71
    %235 = vmatprep.subr.mxu0 0.0
    %236 = vmatpush1.msra.mxu0 %v72
    %237 = vmatprep.subr.mxu0 0.0
    %238 = vmatpush1.msra.mxu0 %v73
    %239 = vmatprep.subr.mxu0 0.0
    %240 = vmatpush1.msra.mxu0 %v74
    %241 = vmatprep.subr.mxu0 0.0
    %242 = vmatpush1.msra.mxu0 %v75
    %243 = vmatprep.subr.mxu0 0.0
    %244 = vmatpush1.msra.mxu0 %v76
    %245 = vmatprep.subr.mxu0 0.0
    %246 = vmatpush1.msra.mxu0 %v77
    %247 = vmatprep.subr.mxu0 0.0
    %248 = vmatpush1.msra.mxu0 %v78
    %249 = vmatprep.subr.mxu0 0.0
    %250 = vmatpush1.msra.mxu0 %v79
    %251 = vmatprep.subr.mxu0 0.0
    %252 = vmatpush1.msra.mxu0 %v80
    %253 = vmatprep.subr.mxu0 0.0
    %254 = vmatpush1.msra.mxu0 %v81
    %255 = vmatprep.subr.mxu0 0.0
    %256 = vmatpush1.msra.mxu0 %v82
    %257 = vmatprep.subr.mxu0 0.0
    %258 = vmatpush1.msra.mxu0 %v83
    %259 = vmatprep.subr.mxu0 0.0
    %260 = vmatpush1.msra.mxu0 %v84
    %261 = vmatprep.subr.mxu0 0.0
    %262 = vmatpush1.msra.mxu0 %v85
    %263 = vmatprep.subr.mxu0 0.0
    %264 = vmatpush1.msra.mxu0 0.0
    %265 = vmatprep.subr.mxu0 0.0
    %266 = vmatpush1.msra.mxu0 0.0
    %267 = vmatprep.subr.mxu0 0.0
    %268 = vmatpush1.msra.mxu0 0.0
    %269 = vmatprep.subr.mxu0 0.0
    %270 = vmatpush1.msra.mxu0 0.0
    %271 = vmatprep.subr.mxu0 0.0
    %272 = vmatpush1.msra.mxu0 0.0
    %273 = vmatprep.subr.mxu0 0.0
    %274 = vmatpush1.msra.mxu0 0.0
    %275 = vmatprep.subr.mxu0 0.0
    %276 = vmatpush1.msra.mxu0 0.0
    %277 = vmatprep.subr.mxu0 0.0
    %278 = vmatpush1.msra.mxu0 0.0
    %279 = vmatprep.subr.mxu0 0.0
    %280 = vmatpush1.msra.mxu0 0.0
    %281 = vmatprep.subr.mxu0 0.0
    %282 = vmatpush1.msra.mxu0 0.0
    %283 = vmatprep.subr.mxu0 0.0
    %284 = vmatpush1.msra.mxu0 0.0
    %285 = vmatprep.subr.mxu0 0.0
    %286 = vmatpush1.msra.mxu0 0.0
    %287 = vmatprep.subr.mxu0 0.0
    %288 = vmatpush1.msra.mxu0 0.0
    %289 = vmatprep.subr.mxu0 0.0
    %290 = vmatpush1.msra.mxu0 0.0
    %291 = vmatprep.subr.mxu0 0.0
    %292 = vmatpush1.msra.mxu0 0.0
    %293 = vmatprep.subr.mxu0 0.0
    %294 = vmatpush1.msra.mxu0 0.0
    %295 = vmatprep.mubr.f32.mxu0 0.0
    %296 = vmatmul.mubr.f32.gmra.mrb[0].mxu0 %v229
    %v297 = vpop.f32.mrb[0].mxu0
    %v298 = vadd.f32 0.0, %v297
    %v299 = vpop.f32.mrb[0].mxu0
    %300 = vdwg.mxu0
    %v301 = vadd.f32 %v230, %v298
    %v302 = vtanh.pop %v301
    %s303 = scalar_lea.vmem [#allocation2], 8
    %v304 = vld [vmem:[%s303] sm:$0xff]
    %305 = vmatprep.subr.mxu0 0.0
    %306 = vmatpush1.msra.mxu0 %v70
    %307 = vmatprep.subr.mxu0 0.0
    %308 = vmatpush1.msra.mxu0 %v71
    %309 = vmatprep.subr.mxu0 0.0
    %310 = vmatpush1.msra.mxu0 %v72
    %311 = vmatprep.subr.mxu0 0.0
    %312 = vmatpush1.msra.mxu0 %v73
    %313 = vmatprep.subr.mxu0 0.0
    %314 = vmatpush1.msra.mxu0 %v74
    %315 = vmatprep.subr.mxu0 0.0
    %316 = vmatpush1.msra.mxu0 %v75
    %317 = vmatprep.subr.mxu0 0.0
    %318 = vmatpush1.msra.mxu0 %v76
    %319 = vmatprep.subr.mxu0 0.0
    %320 = vmatpush1.msra.mxu0 %v77
    %321 = vmatprep.subr.mxu0 0.0
    %322 = vmatpush1.msra.mxu0 %v78
    %323 = vmatprep.subr.mxu0 0.0
    %324 = vmatpush1.msra.mxu0 %v79
    %325 = vmatprep.subr.mxu0 0.0
    %326 = vmatpush1.msra.mxu0 %v80
    %327 = vmatprep.subr.mxu0 0.0
    %328 = vmatpush1.msra.mxu0 %v81
    %329 = vmatprep.subr.mxu0 0.0
    %330 = vmatpush1.msra.mxu0 %v82
    %331 = vmatprep.subr.mxu0 0.0
    %332 = vmatpush1.msra.mxu0 %v83
    %333 = vmatprep.subr.mxu0 0.0
    %334 = vmatpush1.msra.mxu0 %v84
    %335 = vmatprep.subr.mxu0 0.0
    %336 = vmatpush1.msra.mxu0 %v85
    %337 = vmatprep.subr.mxu0 0.0
    %338 = vmatpush1.msra.mxu0 0.0
    %339 = vmatprep.subr.mxu0 0.0
    %340 = vmatpush1.msra.mxu0 0.0
    %341 = vmatprep.subr.mxu0 0.0
    %342 = vmatpush1.msra.mxu0 0.0
    %343 = vmatprep.subr.mxu0 0.0
    %344 = vmatpush1.msra.mxu0 0.0
    %345 = vmatprep.subr.mxu0 0.0
    %346 = vmatpush1.msra.mxu0 0.0
    %347 = vmatprep.subr.mxu0 0.0
    %348 = vmatpush1.msra.mxu0 0.0
    %349 = vmatprep.subr.mxu0 0.0
    %350 = vmatpush1.msra.mxu0 0.0
    %351 = vmatprep.subr.mxu0 0.0
    %352 = vmatpush1.msra.mxu0 0.0
    %353 = vmatprep.subr.mxu0 0.0
    %354 = vmatpush1.msra.mxu0 0.0
    %355 = vmatprep.subr.mxu0 0.0
    %356 = vmatpush1.msra.mxu0 0.0
    %357 = vmatprep.subr.mxu0 0.0
    %358 = vmatpush1.msra.mxu0 0.0
    %359 = vmatprep.subr.mxu0 0.0
    %360 = vmatpush1.msra.mxu0 0.0
    %361 = vmatprep.subr.mxu0 0.0
    %362 = vmatpush1.msra.mxu0 0.0
    %363 = vmatprep.subr.mxu0 0.0
    %364 = vmatpush1.msra.mxu0 0.0
    %365 = vmatprep.subr.mxu0 0.0
    %366 = vmatpush1.msra.mxu0 0.0
    %367 = vmatprep.subr.mxu0 0.0
    %368 = vmatpush1.msra.mxu0 0.0
    %369 = vmatprep.mubr.f32.mxu0 0.0
    %370 = vmatmul.mubr.f32.gmra.mrb[0].mxu0 %v302
    %v371 = vpop.f32.mrb[0].mxu0
    %v372 = vadd.f32 0.0, %v371
    %v373 = vpop.f32.mrb[0].mxu0
    %374 = vdwg.mxu0
    %v375 = vadd.f32 %v304, %v372
    %v376 = vtanh.pop %v375
    %s377 = scalar_lea.vmem [#allocation2], 16
    %v378 = vld [vmem:[%s377] sm:$0xff]
    %379 = vmatprep.subr.mxu0 0.0
    %380 = vmatpush1.msra.mxu0 %v70
    %381 = vmatprep.subr.mxu0 0.0
    %382 = vmatpush1.msra.mxu0 %v71
    %383 = vmatprep.subr.mxu0 0.0
    %384 = vmatpush1.msra.mxu0 %v72
    %385 = vmatprep.subr.mxu0 0.0
    %386 = vmatpush1.msra.mxu0 %v73
    %387 = vmatprep.subr.mxu0 0.0
    %388 = vmatpush1.msra.mxu0 %v74
    %389 = vmatprep.subr.mxu0 0.0
    %390 = vmatpush1.msra.mxu0 %v75
    %391 = vmatprep.subr.mxu0 0.0
    %392 = vmatpush1.msra.mxu0 %v76
    %393 = vmatprep.subr.mxu0 0.0
    %394 = vmatpush1.msra.mxu0 %v77
    %395 = vmatprep.subr.mxu0 0.0
    %396 = vmatpush1.msra.mxu0 %v78
    %397 = vmatprep.subr.mxu0 0.0
    %398 = vmatpush1.msra.mxu0 %v79
    %399 = vmatprep.subr.mxu0 0.0
    %400 = vmatpush1.msra.mxu0 %v80
    %401 = vmatprep.subr.mxu0 0.0
    %402 = vmatpush1.msra.mxu0 %v81
    %403 = vmatprep.subr.mxu0 0.0
    %404 = vmatpush1.msra.mxu0 %v82
    %405 = vmatprep.subr.mxu0 0.0
    %406 = vmatpush1.msra.mxu0 %v83
    %407 = vmatprep.subr.mxu0 0.0
    %408 = vmatpush1.msra.mxu0 %v84
    %409 = vmatprep.subr.mxu0 0.0
    %410 = vmatpush1.msra.mxu0 %v85
    %411 = vmatprep.subr.mxu0 0.0
    %412 = vmatpush1.msra.mxu0 0.0
    %413 = vmatprep.subr.mxu0 0.0
    %414 = vmatpush1.msra.mxu0 0.0
    %415 = vmatprep.subr.mxu0 0.0
    %416 = vmatpush1.msra.mxu0 0.0
    %417 = vmatprep.subr.mxu0 0.0
    %418 = vmatpush1.msra.mxu0 0.0
    %419 = vmatprep.subr.mxu0 0.0
    %420 = vmatpush1.msra.mxu0 0.0
    %421 = vmatprep.subr.mxu0 0.0
    %422 = vmatpush1.msra.mxu0 0.0
    %423 = vmatprep.subr.mxu0 0.0
    %424 = vmatpush1.msra.mxu0 0.0
    %425 = vmatprep.subr.mxu0 0.0
    %426 = vmatpush1.msra.mxu0 0.0
    %427 = vmatprep.subr.mxu0 0.0
    %428 = vmatpush1.msra.mxu0 0.0
    %429 = vmatprep.subr.mxu0 0.0
    %430 = vmatpush1.msra.mxu0 0.0
    %431 = vmatprep.subr.mxu0 0.0
    %432 = vmatpush1.msra.mxu0 0.0
    %433 = vmatprep.subr.mxu0 0.0
    %434 = vmatpush1.msra.mxu0 0.0
    %435 = vmatprep.subr.mxu0 0.0
    %436 = vmatpush1.msra.mxu0 0.0
    %437 = vmatprep.subr.mxu0 0.0
    %438 = vmatpush1.msra.mxu0 0.0
    %439 = vmatprep.subr.mxu0 0.0
    %440 = vmatpush1.msra.mxu0 0.0
    %441 = vmatprep.subr.mxu0 0.0
    %442 = vmatpush1.msra.mxu0 0.0
    %443 = vmatprep.mubr.f32.mxu0 0.0
    %444 = vmatmul.mubr.f32.gmra.mrb[0].mxu0 %v376
    %v445 = vpop.f32.mrb[0].mxu0
    %v446 = vadd.f32 0.0, %v445
    %v447 = vpop.f32.mrb[0].mxu0
    %448 = vdwg.mxu0
    %v449 = vadd.f32 %v378, %v446
    %v450 = vtanh.pop %v449
    %s451 = scalar_lea.vmem [#allocation2], 24
    %v452 = vld [vmem:[%s451] sm:$0xff]
    %453 = vmatprep.subr.mxu0 0.0
    %454 = vmatpush1.msra.mxu0 %v70
    %455 = vmatprep.subr.mxu0 0.0
    %456 = vmatpush1.msra.mxu0 %v71
    %457 = vmatprep.subr.mxu0 0.0
    %458 = vmatpush1.msra.mxu0 %v72
    %459 = vmatprep.subr.mxu0 0.0
    %460 = vmatpush1.msra.mxu0 %v73
    %461 = vmatprep.subr.mxu0 0.0
    %462 = vmatpush1.msra.mxu0 %v74
    %463 = vmatprep.subr.mxu0 0.0
    %464 = vmatpush1.msra.mxu0 %v75
    %465 = vmatprep.subr.mxu0 0.0
    %466 = vmatpush1.msra.mxu0 %v76
    %467 = vmatprep.subr.mxu0 0.0
    %468 = vmatpush1.msra.mxu0 %v77
    %469 = vmatprep.subr.mxu0 0.0
    %470 = vmatpush1.msra.mxu0 %v78
    %471 = vmatprep.subr.mxu0 0.0
    %472 = vmatpush1.msra.mxu0 %v79
    %473 = vmatprep.subr.mxu0 0.0
    %474 = vmatpush1.msra.mxu0 %v80
    %475 = vmatprep.subr.mxu0 0.0
    %476 = vmatpush1.msra.mxu0 %v81
    %477 = vmatprep.subr.mxu0 0.0
    %478 = vmatpush1.msra.mxu0 %v82
    %479 = vmatprep.subr.mxu0 0.0
    %480 = vmatpush1.msra.mxu0 %v83
    %481 = vmatprep.subr.mxu0 0.0
    %482 = vmatpush1.msra.mxu0 %v84
    %483 = vmatprep.subr.mxu0 0.0
    %484 = vmatpush1.msra.mxu0 %v85
    %485 = vmatprep.subr.mxu0 0.0
    %486 = vmatpush1.msra.mxu0 0.0
    %487 = vmatprep.subr.mxu0 0.0
    %488 = vmatpush1.msra.mxu0 0.0
    %489 = vmatprep.subr.mxu0 0.0
    %490 = vmatpush1.msra.mxu0 0.0
    %491 = vmatprep.subr.mxu0 0.0
    %492 = vmatpush1.msra.mxu0 0.0
    %493 = vmatprep.subr.mxu0 0.0
    %494 = vmatpush1.msra.mxu0 0.0
    %495 = vmatprep.subr.mxu0 0.0
    %496 = vmatpush1.msra.mxu0 0.0
    %497 = vmatprep.subr.mxu0 0.0
    %498 = vmatpush1.msra.mxu0 0.0
    %499 = vmatprep.subr.mxu0 0.0
    %500 = vmatpush1.msra.mxu0 0.0
    %501 = vmatprep.subr.mxu0 0.0
    %502 = vmatpush1.msra.mxu0 0.0
    %503 = vmatprep.subr.mxu0 0.0
    %504 = vmatpush1.msra.mxu0 0.0
    %505 = vmatprep.subr.mxu0 0.0
    %506 = vmatpush1.msra.mxu0 0.0
    %507 = vmatprep.subr.mxu0 0.0
    %508 = vmatpush1.msra.mxu0 0.0
    %509 = vmatprep.subr.mxu0 0.0
    %510 = vmatpush1.msra.mxu0 0.0
    %511 = vmatprep.subr.mxu0 0.0
    %512 = vmatpush1.msra.mxu0 0.0
    %513 = vmatprep.subr.mxu0 0.0
    %514 = vmatpush1.msra.mxu0 0.0
    %515 = vmatprep.subr.mxu0 0.0
    %516 = vmatpush1.msra.mxu0 0.0
    %517 = vmatprep.mubr.f32.mxu0 0.0
    %518 = vmatmul.mubr.f32.gmra.mrb[0].mxu0 %v450
    %v519 = vpop.f32.mrb[0].mxu0
    %v520 = vadd.f32 0.0, %v519
    %v521 = vpop.f32.mrb[0].mxu0
    %522 = vdwg.mxu0
    %v523 = vadd.f32 %v452, %v520
    %v524 = vtanh.pop %v523
    %s525 = scalar_lea.vmem [#allocation2], 32
    %v526 = vld [vmem:[%s525] sm:$0xff]
    %527 = vmatprep.subr.mxu0 0.0
    %528 = vmatpush1.msra.mxu0 %v70
    %529 = vmatprep.subr.mxu0 0.0
    %530 = vmatpush1.msra.mxu0 %v71
    %531 = vmatprep.subr.mxu0 0.0
    %532 = vmatpush1.msra.mxu0 %v72
    %533 = vmatprep.subr.mxu0 0.0
    %534 = vmatpush1.msra.mxu0 %v73
    %535 = vmatprep.subr.mxu0 0.0
    %536 = vmatpush1.msra.mxu0 %v74
    %537 = vmatprep.subr.mxu0 0.0
    %538 = vmatpush1.msra.mxu0 %v75
    %539 = vmatprep.subr.mxu0 0.0
    %540 = vmatpush1.msra.mxu0 %v76
    %541 = vmatprep.subr.mxu0 0.0
    %542 = vmatpush1.msra.mxu0 %v77
    %543 = vmatprep.subr.mxu0 0.0
    %544 = vmatpush1.msra.mxu0 %v78
    %545 = vmatprep.subr.mxu0 0.0
    %546 = vmatpush1.msra.mxu0 %v79
    %547 = vmatprep.subr.mxu0 0.0
    %548 = vmatpush1.msra.mxu0 %v80
    %549 = vmatprep.subr.mxu0 0.0
    %550 = vmatpush1.msra.mxu0 %v81
    %551 = vmatprep.subr.mxu0 0.0
    %552 = vmatpush1.msra.mxu0 %v82
    %553 = vmatprep.subr.mxu0 0.0
    %554 = vmatpush1.msra.mxu0 %v83
    %555 = vmatprep.subr.mxu0 0.0
    %556 = vmatpush1.msra.mxu0 %v84
    %557 = vmatprep.subr.mxu0 0.0
    %558 = vmatpush1.msra.mxu0 %v85
    %559 = vmatprep.subr.mxu0 0.0
    %560 = vmatpush1.msra.mxu0 0.0
    %561 = vmatprep.subr.mxu0 0.0
    %562 = vmatpush1.msra.mxu0 0.0
    %563 = vmatprep.subr.mxu0 0.0
    %564 = vmatpush1.msra.mxu0 0.0
    %565 = vmatprep.subr.mxu0 0.0
    %566 = vmatpush1.msra.mxu0 0.0
    %567 = vmatprep.subr.mxu0 0.0
    %568 = vmatpush1.msra.mxu0 0.0
    %569 = vmatprep.subr.mxu0 0.0
    %570 = vmatpush1.msra.mxu0 0.0
    %571 = vmatprep.subr.mxu0 0.0
    %572 = vmatpush1.msra.mxu0 0.0
    %573 = vmatprep.subr.mxu0 0.0
    %574 = vmatpush1.msra.mxu0 0.0
    %575 = vmatprep.subr.mxu0 0.0
    %576 = vmatpush1.msra.mxu0 0.0
    %577 = vmatprep.subr.mxu0 0.0
    %578 = vmatpush1.msra.mxu0 0.0
    %579 = vmatprep.subr.mxu0 0.0
    %580 = vmatpush1.msra.mxu0 0.0
    %581 = vmatprep.subr.mxu0 0.0
    %582 = vmatpush1.msra.mxu0 0.0
    %583 = vmatprep.subr.mxu0 0.0
    %584 = vmatpush1.msra.mxu0 0.0
    %585 = vmatprep.subr.mxu0 0.0
    %586 = vmatpush1.msra.mxu0 0.0
    %587 = vmatprep.subr.mxu0 0.0
    %588 = vmatpush1.msra.mxu0 0.0
    %589 = vmatprep.subr.mxu0 0.0
    %590 = vmatpush1.msra.mxu0 0.0
    %591 = vmatprep.mubr.f32.mxu0 0.0
    %592 = vmatmul.mubr.f32.gmra.mrb[0].mxu0 %v524
    %v593 = vpop.f32.mrb[0].mxu0
    %v594 = vadd.f32 0.0, %v593
    %v595 = vpop.f32.mrb[0].mxu0
    %596 = vdwg.mxu0
    %v597 = vadd.f32 %v526, %v594
    %v598 = vtanh.pop %v597
    %s599 = scalar_lea.vmem [#allocation2], 40
    %v600 = vld [vmem:[%s599] sm:$0xff]
    %601 = vmatprep.subr.mxu0 0.0
    %602 = vmatpush1.msra.mxu0 %v70
    %603 = vmatprep.subr.mxu0 0.0
    %604 = vmatpush1.msra.mxu0 %v71
    %605 = vmatprep.subr.mxu0 0.0
    %606 = vmatpush1.msra.mxu0 %v72
    %607 = vmatprep.subr.mxu0 0.0
    %608 = vmatpush1.msra.mxu0 %v73
    %609 = vmatprep.subr.mxu0 0.0
    %610 = vmatpush1.msra.mxu0 %v74
    %611 = vmatprep.subr.mxu0 0.0
    %612 = vmatpush1.msra.mxu0 %v75
    %613 = vmatprep.subr.mxu0 0.0
    %614 = vmatpush1.msra.mxu0 %v76
    %615 = vmatprep.subr.mxu0 0.0
    %616 = vmatpush1.msra.mxu0 %v77
    %617 = vmatprep.subr.mxu0 0.0
    %618 = vmatpush1.msra.mxu0 %v78
    %619 = vmatprep.subr.mxu0 0.0
    %620 = vmatpush1.msra.mxu0 %v79
    %621 = vmatprep.subr.mxu0 0.0
    %622 = vmatpush1.msra.mxu0 %v80
    %623 = vmatprep.subr.mxu0 0.0
    %624 = vmatpush1.msra.mxu0 %v81
    %625 = vmatprep.subr.mxu0 0.0
    %626 = vmatpush1.msra.mxu0 %v82
    %627 = vmatprep.subr.mxu0 0.0
    %628 = vmatpush1.msra.mxu0 %v83
    %629 = vmatprep.subr.mxu0 0.0
    %630 = vmatpush1.msra.mxu0 %v84
    %631 = vmatprep.subr.mxu0 0.0
    %632 = vmatpush1.msra.mxu0 %v85
    %633 = vmatprep.subr.mxu0 0.0
    %634 = vmatpush1.msra.mxu0 0.0
    %635 = vmatprep.subr.mxu0 0.0
    %636 = vmatpush1.msra.mxu0 0.0
    %637 = vmatprep.subr.mxu0 0.0
    %638 = vmatpush1.msra.mxu0 0.0
    %639 = vmatprep.subr.mxu0 0.0
    %640 = vmatpush1.msra.mxu0 0.0
    %641 = vmatprep.subr.mxu0 0.0
    %642 = vmatpush1.msra.mxu0 0.0
    %643 = vmatprep.subr.mxu0 0.0
    %644 = vmatpush1.msra.mxu0 0.0
    %645 = vmatprep.subr.mxu0 0.0
    %646 = vmatpush1.msra.mxu0 0.0
    %647 = vmatprep.subr.mxu0 0.0
    %648 = vmatpush1.msra.mxu0 0.0
    %649 = vmatprep.subr.mxu0 0.0
    %650 = vmatpush1.msra.mxu0 0.0
    %651 = vmatprep.subr.mxu0 0.0
    %652 = vmatpush1.msra.mxu0 0.0
    %653 = vmatprep.subr.mxu0 0.0
    %654 = vmatpush1.msra.mxu0 0.0
    %655 = vmatprep.subr.mxu0 0.0
    %656 = vmatpush1.msra.mxu0 0.0
    %657 = vmatprep.subr.mxu0 0.0
    %658 = vmatpush1.msra.mxu0 0.0
    %659 = vmatprep.subr.mxu0 0.0
    %660 = vmatpush1.msra.mxu0 0.0
    %661 = vmatprep.subr.mxu0 0.0
    %662 = vmatpush1.msra.mxu0 0.0
    %663 = vmatprep.subr.mxu0 0.0
    %664 = vmatpush1.msra.mxu0 0.0
    %665 = vmatprep.mubr.f32.mxu0 0.0
    %666 = vmatmul.mubr.f32.gmra.mrb[0].mxu0 %v598
    %v667 = vpop.f32.mrb[0].mxu0
    %v668 = vadd.f32 0.0, %v667
    %v669 = vpop.f32.mrb[0].mxu0
    %670 = vdwg.mxu0
    %v671 = vadd.f32 %v600, %v668
    %v672 = vtanh.pop %v671
    %s673 = scalar_lea.vmem [#allocation2], 48
    %v674 = vld [vmem:[%s673] sm:$0xff]
    %675 = vmatprep.subr.mxu0 0.0
    %676 = vmatpush1.msra.mxu0 %v70
    %677 = vmatprep.subr.mxu0 0.0
    %678 = vmatpush1.msra.mxu0 %v71
    %679 = vmatprep.subr.mxu0 0.0
    %680 = vmatpush1.msra.mxu0 %v72
    %681 = vmatprep.subr.mxu0 0.0
    %682 = vmatpush1.msra.mxu0 %v73
    %683 = vmatprep.subr.mxu0 0.0
    %684 = vmatpush1.msra.mxu0 %v74
    %685 = vmatprep.subr.mxu0 0.0
    %686 = vmatpush1.msra.mxu0 %v75
    %687 = vmatprep.subr.mxu0 0.0
    %688 = vmatpush1.msra.mxu0 %v76
    %689 = vmatprep.subr.mxu0 0.0
    %690 = vmatpush1.msra.mxu0 %v77
    %691 = vmatprep.subr.mxu0 0.0
    %692 = vmatpush1.msra.mxu0 %v78
    %693 = vmatprep.subr.mxu0 0.0
    %694 = vmatpush1.msra.mxu0 %v79
    %695 = vmatprep.subr.mxu0 0.0
    %696 = vmatpush1.msra.mxu0 %v80
    %697 = vmatprep.subr.mxu0 0.0
    %698 = vmatpush1.msra.mxu0 %v81
    %699 = vmatprep.subr.mxu0 0.0
    %700 = vmatpush1.msra.mxu0 %v82
    %701 = vmatprep.subr.mxu0 0.0
    %702 = vmatpush1.msra.mxu0 %v83
    %703 = vmatprep.subr.mxu0 0.0
    %704 = vmatpush1.msra.mxu0 %v84
    %705 = vmatprep.subr.mxu0 0.0
    %706 = vmatpush1.msra.mxu0 %v85
    %707 = vmatprep.subr.mxu0 0.0
    %708 = vmatpush1.msra.mxu0 0.0
    %709 = vmatprep.subr.mxu0 0.0
    %710 = vmatpush1.msra.mxu0 0.0
    %711 = vmatprep.subr.mxu0 0.0
    %712 = vmatpush1.msra.mxu0 0.0
    %713 = vmatprep.subr.mxu0 0.0
    %714 = vmatpush1.msra.mxu0 0.0
    %715 = vmatprep.subr.mxu0 0.0
    %716 = vmatpush1.msra.mxu0 0.0
    %717 = vmatprep.subr.mxu0 0.0
    %718 = vmatpush1.msra.mxu0 0.0
    %719 = vmatprep.subr.mxu0 0.0
    %720 = vmatpush1.msra.mxu0 0.0
    %721 = vmatprep.subr.mxu0 0.0
    %722 = vmatpush1.msra.mxu0 0.0
    %723 = vmatprep.subr.mxu0 0.0
    %724 = vmatpush1.msra.mxu0 0.0
    %725 = vmatprep.subr.mxu0 0.0
    %726 = vmatpush1.msra.mxu0 0.0
    %727 = vmatprep.subr.mxu0 0.0
    %728 = vmatpush1.msra.mxu0 0.0
    %729 = vmatprep.subr.mxu0 0.0
    %730 = vmatpush1.msra.mxu0 0.0
    %731 = vmatprep.subr.mxu0 0.0
    %732 = vmatpush1.msra.mxu0 0.0
    %733 = vmatprep.subr.mxu0 0.0
    %734 = vmatpush1.msra.mxu0 0.0
    %735 = vmatprep.subr.mxu0 0.0
    %736 = vmatpush1.msra.mxu0 0.0
    %737 = vmatprep.subr.mxu0 0.0
    %738 = vmatpush1.msra.mxu0 0.0
    %739 = vmatprep.mubr.f32.mxu0 0.0
    %740 = vmatmul.mubr.f32.gmra.mrb[0].mxu0 %v672
    %v741 = vpop.f32.mrb[0].mxu0
    %v742 = vadd.f32 0.0, %v741
    %v743 = vpop.f32.mrb[0].mxu0
    %744 = vdwg.mxu0
    %v745 = vadd.f32 %v674, %v742
    %v746 = vtanh.pop %v745
    %s747 = scalar_lea.vmem [#allocation2], 56
    %v748 = vld [vmem:[%s747] sm:$0xff]
    %749 = vmatprep.subr.mxu0 0.0
    %750 = vmatpush1.msra.mxu0 %v70
    %751 = vmatprep.subr.mxu0 0.0
    %752 = vmatpush1.msra.mxu0 %v71
    %753 = vmatprep.subr.mxu0 0.0
    %754 = vmatpush1.msra.mxu0 %v72
    %755 = vmatprep.subr.mxu0 0.0
    %756 = vmatpush1.msra.mxu0 %v73
    %757 = vmatprep.subr.mxu0 0.0
    %758 = vmatpush1.msra.mxu0 %v74
    %759 = vmatprep.subr.mxu0 0.0
    %760 = vmatpush1.msra.mxu0 %v75
    %761 = vmatprep.subr.mxu0 0.0
    %762 = vmatpush1.msra.mxu0 %v76
    %763 = vmatprep.subr.mxu0 0.0
    %764 = vmatpush1.msra.mxu0 %v77
    %765 = vmatprep.subr.mxu0 0.0
    %766 = vmatpush1.msra.mxu0 %v78
    %767 = vmatprep.subr.mxu0 0.0
    %768 = vmatpush1.msra.mxu0 %v79
    %769 = vmatprep.subr.mxu0 0.0
    %770 = vmatpush1.msra.mxu0 %v80
    %771 = vmatprep.subr.mxu0 0.0
    %772 = vmatpush1.msra.mxu0 %v81
    %773 = vmatprep.subr.mxu0 0.0
    %774 = vmatpush1.msra.mxu0 %v82
    %775 = vmatprep.subr.mxu0 0.0
    %776 = vmatpush1.msra.mxu0 %v83
    %777 = vmatprep.subr.mxu0 0.0
    %778 = vmatpush1.msra.mxu0 %v84
    %779 = vmatprep.subr.mxu0 0.0
    %780 = vmatpush1.msra.mxu0 %v85
    %781 = vmatprep.subr.mxu0 0.0
    %782 = vmatpush1.msra.mxu0 0.0
    %783 = vmatprep.subr.mxu0 0.0
    %784 = vmatpush1.msra.mxu0 0.0
    %785 = vmatprep.subr.mxu0 0.0
    %786 = vmatpush1.msra.mxu0 0.0
    %787 = vmatprep.subr.mxu0 0.0
    %788 = vmatpush1.msra.mxu0 0.0
    %789 = vmatprep.subr.mxu0 0.0
    %790 = vmatpush1.msra.mxu0 0.0
    %791 = vmatprep.subr.mxu0 0.0
    %792 = vmatpush1.msra.mxu0 0.0
    %793 = vmatprep.subr.mxu0 0.0
    %794 = vmatpush1.msra.mxu0 0.0
    %795 = vmatprep.subr.mxu0 0.0
    %796 = vmatpush1.msra.mxu0 0.0
    %797 = vmatprep.subr.mxu0 0.0
    %798 = vmatpush1.msra.mxu0 0.0
    %799 = vmatprep.subr.mxu0 0.0
    %800 = vmatpush1.msra.mxu0 0.0
    %801 = vmatprep.subr.mxu0 0.0
    %802 = vmatpush1.msra.mxu0 0.0
    %803 = vmatprep.subr.mxu0 0.0
    %804 = vmatpush1.msra.mxu0 0.0
    %805 = vmatprep.subr.mxu0 0.0
    %806 = vmatpush1.msra.mxu0 0.0
    %807 = vmatprep.subr.mxu0 0.0
    %808 = vmatpush1.msra.mxu0 0.0
    %809 = vmatprep.subr.mxu0 0.0
    %810 = vmatpush1.msra.mxu0 0.0
    %811 = vmatprep.subr.mxu0 0.0
    %812 = vmatpush1.msra.mxu0 0.0
    %813 = vmatprep.mubr.f32.mxu0 0.0
    %814 = vmatmul.mubr.f32.gmra.mrb[0].mxu0 %v746
    %v815 = vpop.f32.mrb[0].mxu0
    %v816 = vadd.f32 0.0, %v815
    %v817 = vpop.f32.mrb[0].mxu0
    %818 = vdwg.mxu0
    %v819 = vadd.f32 %v748, %v816
    %v820 = vtanh.pop %v819
    %v821 = vlaneseq
    %v822 = vshrl.u32 %v821, 7
    %v823 = vsub.s32 0, %v822
    %v824 = vrot.slane %v103, %v823
    %825 = vmatprep.subr.mxu0 0.0
    %826 = vmatpush1.msra.mxu0 %v86
    %827 = vmatprep.subr.mxu0 0.0
    %828 = vmatpush1.msra.mxu0 %v87
    %829 = vmatprep.subr.mxu0 0.0
    %830 = vmatpush1.msra.mxu0 %v88
    %831 = vmatprep.subr.mxu0 0.0
    %832 = vmatpush1.msra.mxu0 %v89
    %833 = vmatprep.subr.mxu0 0.0
    %834 = vmatpush1.msra.mxu0 %v90
    %835 = vmatprep.subr.mxu0 0.0
    %836 = vmatpush1.msra.mxu0 %v91
    %837 = vmatprep.subr.mxu0 0.0
    %838 = vmatpush1.msra.mxu0 %v92
    %839 = vmatprep.subr.mxu0 0.0
    %840 = vmatpush1.msra.mxu0 %v93
    %841 = vmatprep.subr.mxu0 0.0
    %842 = vmatpush1.msra.mxu0 %v94
    %843 = vmatprep.subr.mxu0 0.0
    %844 = vmatpush1.msra.mxu0 %v95
    %845 = vmatprep.subr.mxu0 0.0
    %846 = vmatpush1.msra.mxu0 %v96
    %847 = vmatprep.subr.mxu0 0.0
    %848 = vmatpush1.msra.mxu0 %v97
    %849 = vmatprep.subr.mxu0 0.0
    %850 = vmatpush1.msra.mxu0 %v98
    %851 = vmatprep.subr.mxu0 0.0
    %852 = vmatpush1.msra.mxu0 %v99
    %853 = vmatprep.subr.mxu0 0.0
    %854 = vmatpush1.msra.mxu0 %v100
    %855 = vmatprep.subr.mxu0 0.0
    %856 = vmatpush1.msra.mxu0 %v101
    %857 = vmatprep.subr.mxu0 0.0
    %858 = vmatpush1.msra.mxu0 0.0
    %859 = vmatprep.subr.mxu0 0.0
    %860 = vmatpush1.msra.mxu0 0.0
    %861 = vmatprep.subr.mxu0 0.0
    %862 = vmatpush1.msra.mxu0 0.0
    %863 = vmatprep.subr.mxu0 0.0
    %864 = vmatpush1.msra.mxu0 0.0
    %865 = vmatprep.subr.mxu0 0.0
    %866 = vmatpush1.msra.mxu0 0.0
    %867 = vmatprep.subr.mxu0 0.0
    %868 = vmatpush1.msra.mxu0 0.0
    %869 = vmatprep.subr.mxu0 0.0
    %870 = vmatpush1.msra.mxu0 0.0
    %871 = vmatprep.subr.mxu0 0.0
    %872 = vmatpush1.msra.mxu0 0.0
    %873 = vmatprep.subr.mxu0 0.0
    %874 = vmatpush1.msra.mxu0 0.0
    %875 = vmatprep.subr.mxu0 0.0
    %876 = vmatpush1.msra.mxu0 0.0
    %877 = vmatprep.subr.mxu0 0.0
    %878 = vmatpush1.msra.mxu0 0.0
    %879 = vmatprep.subr.mxu0 0.0
    %880 = vmatpush1.msra.mxu0 0.0
    %881 = vmatprep.subr.mxu0 0.0
    %882 = vmatpush1.msra.mxu0 0.0
    %883 = vmatprep.subr.mxu0 0.0
    %884 = vmatpush1.msra.mxu0 0.0
    %885 = vmatprep.subr.mxu0 0.0
    %886 = vmatpush1.msra.mxu0 0.0
    %887 = vmatprep.subr.mxu0 0.0
    %888 = vmatpush1.msra.mxu0 0.0
    %889 = vmatprep.mubr.f32.mxu0 0.0
    %890 = vmatmul.mubr.f32.gmra.mrb[0].mxu0 %v820
    %v891 = vpop.f32.mrb[0].mxu0
    %v892 = vadd.f32 %v824, %v891
    %v893 = vpop.f32.mrb[0].mxu0
    %894 = vdwg.mxu0
    %895 = vmax.xlane.f32.xlu0 %v892
    %v896 = vpop.xlane.xlu0 %895
    %v897 = vsub.f32 %v892, %v896
    %v898 = vmul.f32 %v897, 1.442695
    %v899 = vpow.pop %v898
    %900 = vadd.xlane.f32.xlu0 %v899
    %v901 = vpop.xlane.xlu0 %900
    %v902 = vlog2.pop %v901
    %v903 = vmul.f32 %v902, 0.6931472
    %v904 = vadd.f32 %v896, %v903
    %v905 = vsub.f32 %v892, %v904
    %906 = vst [vmem:[#allocation9] sm:$0xff] %v905
    %907 = vst [vmem:[#allocation9 + $0x8] sm:$0xff] %v820
    // Predicated region
    $region26: #{tpu_custom_call.1} parent=1 // pred_check
      _
    $region27: #{tpu_custom_call.1} parent=1 // pred_check_branch
      %909 = sbr.rel (0) target = $region29
    $region28: #{tpu_custom_call.1} parent=1 // pred_region
      %s911 = ssub.s32 256, 256
      %912 = vsyncadd [#allocation5], %s911
      %s913 = sshll.u32 [#allocation9], 4
      %s914 = int_to_ptr.vmem [resolvable:$true] %s913
      %919 = dma.vmem_to_hbm [thread:$0]  %s914, 256, %s3, [#allocation5], 128, 128, 8
    $region29: #{tpu_custom_call.1} parent=1 // pred_fallthru
      _
    // Predicated region
    $region30: #{tpu_custom_call.1} parent=1 // pred_check
      _
    $region31: #{tpu_custom_call.1} parent=1 // pred_check_branch
      %921 = sbr.rel (0) target = $region33
    $region32: #{tpu_custom_call.1} parent=1 // pred_region
      %922 = dma.done [#allocation5], 256
    $region33: #{tpu_custom_call.1} parent=1 // pred_fallthru
      _
    %923 = vsyncpa [#allocation4], 1
    %924 = vsyncpa [#allocation7], 1
    %925 = vsyncpa [#allocation5], 1

</llo_original>
